<compile_context>
chip_gen: v6e
topology: v6e:2x2x1
jax: 0.10.0
libtpu: 0.0.40
codegen_flags: <defaults>
</compile_context>

<pallas_src>
import functools

import jax
import jax.numpy as jnp
from jax import lax
from jax.experimental import pallas as pl
from jax.experimental.pallas import tpu as pltpu


def _ls_ce_kernel(pred_ref, tgt_ref, out_ref, *, smoothing, n_valid):
    # pred_ref: (TN, C) logits tile in VMEM
    # tgt_ref : (TN, 1) int32 class indices tile in VMEM
    # out_ref : (1, 8, 128) f32 lane-dense partial-sum block for this tile
    x = pred_ref[...].astype(jnp.float32)                        # (TN, C)
    tn, c = x.shape

    # Mask rows that are padding in the (possibly partial) last tile.
    row_ids = pl.program_id(0) * tn + lax.broadcasted_iota(
        jnp.int32, (tn, 1), 0)                                   # (TN, 1)
    valid = (row_ids < n_valid).astype(jnp.float32)              # (TN, 1)

    # Target-class one-hot mask (compare only, no per-element multiply chain).
    tgt = tgt_ref[...]                                           # (TN, 1) int32
    cls = lax.broadcasted_iota(jnp.int32, x.shape, 1)            # (TN, C)
    is_tgt = cls == tgt                                          # (TN, C) bool

    # Numerically stable logsumexp pieces.
    m = jnp.max(x, axis=-1, keepdims=True)                       # (TN, 1)
    l = jnp.sum(jnp.exp(x - m), axis=-1, keepdims=True)          # (TN, 1)

    # VALU-lean weighted sum:
    #   ws = (s/C) * sum_c x_c + (1 - s) * x[target]
    # so that loss_row = (m + log l) - ws, which equals
    # (1-s)*nll + s*smooth of the reference without materializing log_probs.
    sum_x = jnp.sum(x, axis=-1, keepdims=True)                   # (TN, 1)
    tgt_x = jnp.sum(jnp.where(is_tgt, x, 0.0), axis=-1, keepdims=True)
    uni = smoothing / c
    ws = uni * sum_x + (1.0 - smoothing) * tgt_x                 # (TN, 1)

    per_row = m + jnp.log(l) - ws                                # (TN, 1)
    partial = jnp.sum(per_row * valid)                           # scalar tile sum

    # Lane-dense store of this tile's partial sum (broadcast over the block).
    out_ref[...] = jnp.full(out_ref.shape, partial, dtype=jnp.float32)


def label_smoothing_cross_entropy(pred, target, smoothing=0.1, tile_rows=None):
    """pred: (N, C) float logits, target: (N,) int class ids -> scalar f32 loss."""
    n, c = pred.shape

    if tile_rows is None:
        # Dtype-aware row alignment: f32 -> 8 sublanes, bf16 -> 16, int8 -> 32.
        itemsize = jnp.dtype(pred.dtype).itemsize
        row_align = 8 * max(1, 4 // max(1, itemsize))

        # Size the tile by bytes: ~4 MiB f32 working copy per grid step.
        # (x2 double-buffered input + a few f32 temporaries stays well inside
        #  the 32 MiB scoped-VMEM limit requested below; safe on v7x's 64 MiB.)
        budget_bytes = 4 * 1024 * 1024
        tn = (budget_bytes // (c * 4)) // row_align * row_align
        tn = max(row_align, tn)

        # No point in a tile larger than the (alignment-rounded) batch.
        n_rounded = -(-n // row_align) * row_align
        tn = min(tn, n_rounded)

        # Megacore: prefer >= 2 grid steps when the batch allows it (v7x has
        # 2 TensorCores; the grid axis below is marked "parallel").
        if tn >= n_rounded and n_rounded > row_align:
            half = -(-(n_rounded // 2) // row_align) * row_align
            tn = max(row_align, half)
    else:
        tn = int(tile_rows)

    num_tiles = -(-n // tn)
    n_pad = num_tiles * tn
    if n_pad != n:
        pred = jnp.pad(pred, ((0, n_pad - n), (0, 0)))
        target = jnp.pad(target, (0, n_pad - n))
    tgt2d = target.astype(jnp.int32).reshape(n_pad, 1)

    kernel = functools.partial(
        _ls_ce_kernel, smoothing=float(smoothing), n_valid=n)

    partials = pl.pallas_call(
        kernel,
        out_shape=jax.ShapeDtypeStruct((num_tiles, 8, 128), jnp.float32),
        grid_spec=pltpu.PrefetchScalarGridSpec(
            num_scalar_prefetch=0,
            grid=(num_tiles,),
            in_specs=[
                pl.BlockSpec((tn, c), lambda i: (i, 0)),
                pl.BlockSpec((tn, 1), lambda i: (i, 0)),
            ],
            out_specs=pl.BlockSpec((1, 8, 128), lambda i: (i, 0, 0)),
        ),
        compiler_params=pltpu.CompilerParams(
            dimension_semantics=("parallel",),
            vmem_limit_bytes=32 * 1024 * 1024,
        ),
    )(pred, tgt2d)

    # Final batch mean over the true N (independent per-tile partial sums).
    return jnp.sum(partials[:, 0, 0]) / n


def _reference(pred, target, smoothing=0.1):
    log_probs = jax.nn.log_softmax(pred.astype(jnp.float32), axis=-1)
    nll = -jnp.take_along_axis(log_probs, target[:, None], axis=-1)[:, 0]
    smooth = -jnp.mean(log_probs, axis=-1)
    return jnp.mean((1.0 - smoothing) * nll + smoothing * smooth)


if __name__ == "__main__":
    key = jax.random.PRNGKey(0)
    k1, k2, k3, k4, k5, k6 = jax.random.split(key, 6)

    # Case 1: single small tile (batch=8, classes=32), f32 logits.
    N, C = 8, 32
    pred = jax.random.normal(k1, (N, C), dtype=jnp.float32)
    target = jax.random.randint(k2, (N,), 0, C, dtype=jnp.int32)
    loss = jax.block_until_ready(
        label_smoothing_cross_entropy(pred, target, smoothing=0.1))
    ref = _reference(pred, target, smoothing=0.1)
    assert jnp.allclose(loss, ref, atol=1e-5, rtol=1e-5), (loss, ref)

    # Case 2: multiple tiles with a partial (masked) last tile
    # (batch=20, classes=32, forced 8-row tiles -> 3 grid steps).
    N2, C2 = 20, 32
    pred2 = jax.random.normal(k3, (N2, C2), dtype=jnp.float32)
    target2 = jax.random.randint(k4, (N2,), 0, C2, dtype=jnp.int32)
    loss2 = jax.block_until_ready(
        label_smoothing_cross_entropy(pred2, target2, smoothing=0.1,
                                      tile_rows=8))
    ref2 = _reference(pred2, target2, smoothing=0.1)
    assert jnp.allclose(loss2, ref2, atol=1e-5, rtol=1e-5), (loss2, ref2)

    # Case 3: bf16 logits, auto tile sizing (exercises dtype-aware alignment
    # and the >=2-tile megacore split: batch=48 -> two 24... rounded to 32-row
    # tiles with the second tile partially masked).
    N3, C3 = 48, 128
    pred3 = jax.random.normal(k5, (N3, C3), dtype=jnp.float32).astype(jnp.bfloat16)
    target3 = jax.random.randint(k6, (N3,), 0, C3, dtype=jnp.int32)
    loss3 = jax.block_until_ready(
        label_smoothing_cross_entropy(pred3, target3, smoothing=0.1))
    ref3 = _reference(pred3, target3, smoothing=0.1)
    assert jnp.allclose(loss3, ref3, atol=1e-4, rtol=1e-4), (loss3, ref3)

    print("KERNEL_OK")
</pallas_src>

<mosaic_0001>
module attributes {stable_mosaic.version = 11 : i64} {
  func.func @_ls_ce_kernel(%arg0: i32, %arg1: memref<8x32xf32, #tpu.memory_space<vmem>>, %arg2: memref<8x1xi32, #tpu.memory_space<vmem>>, %arg3: memref<1x8x128xf32, #tpu.memory_space<vmem>>) attributes {dimension_semantics = [#tpu.dimension_semantics<parallel>], iteration_bounds = array<i64: 1>, scalar_prefetch = 0 : i64, scratch_operands = 0 : i64, tpu.core_type = #tpu.core_type<tc>, window_params = [{transform_indices = @transform_0, window_bounds = array<i64: 8, 32>}, {transform_indices = @transform_1, window_bounds = array<i64: 8, 1>}, {transform_indices = @transform_2, window_bounds = array<i64: 1, 8, 128>}]} {
    %c0 = arith.constant 0 : index
    %c0_0 = arith.constant 0 : index
    %0 = vector.load %arg1[%c0, %c0_0] : memref<8x32xf32, #tpu.memory_space<vmem>>, vector<8x32xf32>
    %c8_i32 = arith.constant 8 : i32
    %1 = arith.muli %arg0, %c8_i32 : i32
    %2 = tpu.iota {dimensions = array<i32: 0>} : vector<8x1xi32>
    %3 = vector.broadcast %1 : i32 to vector<8x1xi32>
    %4 = arith.addi %3, %2 : vector<8x1xi32>
    %c8_i32_1 = arith.constant 8 : i32
    %5 = vector.broadcast %c8_i32_1 : i32 to vector<8x1xi32>
    %6 = arith.cmpi slt, %4, %5 : vector<8x1xi32>
    %7 = arith.extui %6 : vector<8x1xi1> to vector<8x1xi32>
    %8 = arith.sitofp %7 : vector<8x1xi32> to vector<8x1xf32>
    %c0_2 = arith.constant 0 : index
    %c0_3 = arith.constant 0 : index
    %9 = vector.load %arg2[%c0_2, %c0_3] : memref<8x1xi32, #tpu.memory_space<vmem>>, vector<8x1xi32>
    %10 = tpu.iota {dimensions = array<i32: 1>} : vector<8x32xi32>
    %11 = vector.broadcast %9 : vector<8x1xi32> to vector<8x32xi32>
    %12 = arith.cmpi eq, %10, %11 : vector<8x32xi32>
    %cst = arith.constant dense<0xFF800000> : vector<8xf32>
    %13 = vector.multi_reduction <maximumf>, %0, %cst [1] : vector<8x32xf32> to vector<8xf32>
    %14 = vector.shape_cast %13 : vector<8xf32> to vector<8x1xf32>
    %15 = vector.broadcast %14 : vector<8x1xf32> to vector<8x32xf32>
    %16 = arith.subf %0, %15 : vector<8x32xf32>
    %17 = math.exp %16 : vector<8x32xf32>
    %cst_4 = arith.constant dense<0.000000e+00> : vector<8xf32>
    %18 = vector.multi_reduction <add>, %17, %cst_4 [1] : vector<8x32xf32> to vector<8xf32>
    %19 = vector.shape_cast %18 : vector<8xf32> to vector<8x1xf32>
    %cst_5 = arith.constant dense<0.000000e+00> : vector<8xf32>
    %20 = vector.multi_reduction <add>, %0, %cst_5 [1] : vector<8x32xf32> to vector<8xf32>
    %21 = vector.shape_cast %20 : vector<8xf32> to vector<8x1xf32>
    %cst_6 = arith.constant 0.000000e+00 : f32
    %22 = vector.broadcast %cst_6 : f32 to vector<8x32xf32>
    %23 = arith.select %12, %0, %22 : vector<8x32xi1>, vector<8x32xf32>
    %cst_7 = arith.constant dense<0.000000e+00> : vector<8xf32>
    %24 = vector.multi_reduction <add>, %23, %cst_7 [1] : vector<8x32xf32> to vector<8xf32>
    %25 = vector.shape_cast %24 : vector<8xf32> to vector<8x1xf32>
    %cst_8 = arith.constant 3.125000e-03 : f32
    %26 = vector.broadcast %cst_8 : f32 to vector<8x1xf32>
    %27 = arith.mulf %26, %21 : vector<8x1xf32>
    %cst_9 = arith.constant 0.899999976 : f32
    %28 = vector.broadcast %cst_9 : f32 to vector<8x1xf32>
    %29 = arith.mulf %28, %25 : vector<8x1xf32>
    %30 = arith.addf %27, %29 : vector<8x1xf32>
    %31 = math.log %19 : vector<8x1xf32>
    %32 = arith.addf %14, %31 : vector<8x1xf32>
    %33 = arith.subf %32, %30 : vector<8x1xf32>
    %34 = arith.mulf %33, %8 : vector<8x1xf32>
    %35 = vector.shape_cast %34 : vector<8x1xf32> to vector<1x8x1xf32>
    %cst_10 = arith.constant dense<0.000000e+00> : vector<1xf32>
    %36 = vector.multi_reduction <add>, %35, %cst_10 [1, 2] : vector<1x8x1xf32> to vector<1xf32>
    %37 = vector.shape_cast %36 : vector<1xf32> to vector<1x1x1xf32>
    %38 = vector.extract %37[0, 0, 0] : f32 from vector<1x1x1xf32>
    %39 = vector.broadcast %38 : f32 to vector<1x8x128xf32>
    %c0_11 = arith.constant 0 : index
    %c0_12 = arith.constant 0 : index
    %c0_13 = arith.constant 0 : index
    %40 = vector.load %arg3[%c0_11, %c0_12, %c0_13] : memref<1x8x128xf32, #tpu.memory_space<vmem>>, vector<1x8x128xf32>
    tpu.vector_store %arg3[%c0_11, %c0_12, %c0_13], %39 {strides = array<i32>} : memref<1x8x128xf32, #tpu.memory_space<vmem>>, vector<1x8x128xf32>,
    return
  }
  func.func @transform_0(%arg0: i32) -> (i32, i32) {
    %c0_i32 = arith.constant 0 : i32
    %c0_i32_0 = arith.constant 0 : i32
    return %arg0, %c0_i32 : i32, i32
  }
  func.func @transform_1(%arg0: i32) -> (i32, i32) {
    %c0_i32 = arith.constant 0 : i32
    %c0_i32_0 = arith.constant 0 : i32
    return %arg0, %c0_i32 : i32, i32
  }
  func.func @transform_2(%arg0: i32) -> (i32, i32, i32) {
    %c0_i32 = arith.constant 0 : i32
    %c0_i32_0 = arith.constant 0 : i32
    %c0_i32_1 = arith.constant 0 : i32
    return %arg0, %c0_i32, %c0_i32_0 : i32, i32, i32
  }
}

</mosaic_0001>

<llo_original>
// kernel: tpu_custom_call.1
$region0: #{tpu_custom_call.1}
  #allocation0 [shape = 'u32[]', space=smem, size = 0x4, offset = 0x4, fixed_abs, tag = 'smem constant byte address 0x4 - core index']
  #allocation1 [shape = 'u32[144,128]{1,0:T(1,128)}', space=vmem, size = 0x12000, scoped, tag = 'internal scratch']
  %s0 = inlined_call_operand.vmem [shape: f32[8,32], index: 0, kind: input, shape index: {}]
  %s1 = inlined_call_operand.vmem [shape: s32[8,1], index: 1, kind: input, shape index: {}]
  %s2 = inlined_call_operand.hbm [shape: f32[1,8,128], index: 2, kind: output, shape index: {}]
  %s3 = sld [smem:[#allocation0]]
  $region18: #{tpu_custom_call.1} parent=0
    _
  %s5 = ssub.s32 1, %s3
  %s6 = scalar_select 0, %s5, %s3
  $region1: #{tpu_custom_call.1} parent=0
    #allocation2 [shape = 'u8[4096]{0}', space=vmem, size = 0x1000, scoped, tag = 'output window, operand 0, single buffered']
    #allocation3 [shape = 's32[1]{0}', space=sflag, size = 0x4, scoped, tag = 'scoped memory for tpu_custom_call.1']
    %7 = vsyncpa [#allocation3], 0
    // Predicated region
    $region2: #{tpu_custom_call.1} parent=1 // pred_check
      _
    $region3: #{tpu_custom_call.1} parent=1 // pred_check_branch
      %9 = sbr.rel (0) target = $region5
    $region4: #{tpu_custom_call.1} parent=1 // pred_region
      _
    $region5: #{tpu_custom_call.1} parent=1 // pred_fallthru
      _
    // Predicated region
    $region6: #{tpu_custom_call.1} parent=1 // pred_check
      _
    $region7: #{tpu_custom_call.1} parent=1 // pred_check_branch
      %11 = sbr.rel (0) target = $region9
    $region8: #{tpu_custom_call.1} parent=1 // pred_region
      _
    $region9: #{tpu_custom_call.1} parent=1 // pred_fallthru
      _
    %v12 = vld [vmem:[%s0] sm:$0xff]
    %s13 = smul.u32 0, 8
    %v14 = vlaneseq
    %v15 = vshrl.u32 %v14, 7
    %v16 = vstv %s13
    %v17 = vadd.s32 %v16, %v15
    %vm18 = vcmp.lt.s32.totalorder %v17, 8
    %v19 = vsel %vm18, 1, 0
    %v20 = vcvt.s32.f32 %v19
    %v21 = vld [vmem:[%s1] sm:$0xff]
    %v22 = vlaneseq
    %v23 = vand.u32 %v22, 127
    %24 = vset.pattern.permute.xlu0 0
    %25 = vperm.xlu0 %24, %v21
    %v26 = vpop.permute.xlu0 %25
    %vm27 = vcmp.eq.s32.totalorder %v23, %v26
    %vm28 = vcmask 261120
    %v29 = vsel %vm28, %v12, -inf
    %30 = vmax.xlane.f32.xlu0 %v29
    %v31 = vpop.xlane.xlu0 %30
    %v32 = vsub.f32 %v12, %v31
    %v33 = vmul.f32 %v32, 1.442695
    %v34 = vpow.pop %v33
    %v35 = vsel %vm28, %v34, 0.0
    %36 = vadd.xlane.f32.xlu0 %v35
    %v37 = vpop.xlane.xlu0 %36
    %v38 = vsel %vm28, %v12, 0.0
    %39 = vadd.xlane.f32.xlu0 %v38
    %v40 = vpop.xlane.xlu0 %39
    %v41 = vsel %vm27, %v12, 0.0
    %v42 = vsel %vm28, %v41, 0.0
    %43 = vadd.xlane.f32.xlu0 %v42
    %v44 = vpop.xlane.xlu0 %43
    %v45 = vmul.f32 %v40, 0.003125
    %v46 = vmul.f32 %v44, 0.9
    %v47 = vadd.f32 %v45, %v46
    %v48 = vlog2.pop %v37
    %v49 = vmul.f32 %v48, 0.6931472
    %v50 = vadd.f32 %v31, %v49
    %v51 = vsub.f32 %v50, %v47
    %v52 = vmul.f32 %v51, %v20
    %vm53 = vcmask 7168
    %v54 = vsel %vm53, %v52, 0.0
    %55 = vadd.xlane.f32.xlu0 %v54
    %v56 = vpop.xlane.xlu0 %55
    %v57 = vrot.slane %v56, 4
    %v58 = vadd.f32 %v56, %v57
    %v59 = vrot.slane %v58, 2
    %v60 = vadd.f32 %v58, %v59
    %v61 = vrot.slane %v60, 1
    %v62 = vadd.f32 %v60, %v61
    %s63 = vtos %v62
    %v64 = vstv %s63
    %65 = vst [vmem:[#allocation2] sm:$0xff] %v64
    // Predicated region
    $region10: #{tpu_custom_call.1} parent=1 // pred_check
      _
    $region11: #{tpu_custom_call.1} parent=1 // pred_check_branch
      %67 = sbr.rel (0) target = $region13
    $region12: #{tpu_custom_call.1} parent=1 // pred_region
      %s69 = ssub.s32 128, 128
      %70 = vsyncadd [#allocation3], %s69
      %s72 = sshll.u32 [#allocation2], 4
      %s73 = int_to_ptr.vmem [resolvable:$true] %s72
      %75 = dma.vmem_to_hbm [thread:$0]  %s73, 128, %s2, [#allocation3]
    $region13: #{tpu_custom_call.1} parent=1 // pred_fallthru
      _
    // Predicated region
    $region14: #{tpu_custom_call.1} parent=1 // pred_check
      _
    $region15: #{tpu_custom_call.1} parent=1 // pred_check_branch
      %77 = sbr.rel (0) target = $region17
    $region16: #{tpu_custom_call.1} parent=1 // pred_region
      %78 = dma.done [#allocation3], 128
    $region17: #{tpu_custom_call.1} parent=1 // pred_fallthru
      _
    %79 = vsyncpa [#allocation3], 1

</llo_original>
